<compile_context>
chip_gen: v7x
topology: tpu7x:2x2x1
jax: 0.10.0
libtpu: 0.0.40
codegen_flags: <defaults>
</compile_context>

<pallas_src>
import functools
import string

import jax
import jax.numpy as jnp
from jax.experimental import pallas as pl
from jax.experimental.pallas import tpu as pltpu

LANE = 128


# ----------------------------------------------------------------------------
# Kernel: whole sequence in one invocation, time loop in-kernel.
# ----------------------------------------------------------------------------
def rnn_seq_kernel(len_ref,       # SMEM (1,) int32  (scalar prefetch: true length)
                   x_slab_ref,    # (T_max, H)  = W_ih[letters] + b_ih + b_hh
                   h0_ref,        # (1, H)
                   w_hh_ref,      # (H, H)      VMEM-resident
                   w_ho_ref,      # (H, OUT_PAD)
                   b_ho_ref,      # (1, OUT_PAD) (pad cols = -1e30)
                   out_ref,       # (1, OUT_PAD) last-step log_softmax
                   hid_ref):      # (1, H)       final hidden
    n_steps = len_ref[0]
    w_hh = w_hh_ref[...]
    h0 = h0_ref[...].astype(jnp.float32)

    def step(t, h):
        # x_t already includes the fused biases; one (1,H)@(H,H) MXU matmul
        # + tanh per step is the whole recurrence body.
        x_row = x_slab_ref[pl.ds(t, 1), :]
        return jnp.tanh(x_row + jnp.dot(h, w_hh,
                                        preferred_element_type=jnp.float32))

    h = jax.lax.fori_loop(0, n_steps, step, h0)

    # Classifier + log_softmax once, after the loop (only the last step's
    # output is consumed by the tutorial).  Kept in f32.
    logits = (jnp.dot(h, w_ho_ref[...], preferred_element_type=jnp.float32)
              + b_ho_ref[...])
    m = jnp.max(logits, axis=-1, keepdims=True)
    shifted = logits - m
    lse = jnp.log(jnp.sum(jnp.exp(shifted), axis=-1, keepdims=True))
    out_ref[...] = (shifted - lse).astype(out_ref.dtype)
    hid_ref[...] = h.astype(hid_ref.dtype)


# ----------------------------------------------------------------------------
# Wrappers
# ----------------------------------------------------------------------------
@functools.partial(jax.jit, static_argnames=("output_size",))
def _rnn_forward_padded(letters_padded, length, h0, packed_params, output_size):
    """letters_padded: (T_max,) int32, length: scalar int (true T <= T_max)."""
    w_ih_b, w_hh, w_ho_p, b_ho_p = packed_params
    T_max = letters_padded.shape[0]
    H = w_hh.shape[0]
    out_pad = w_ho_p.shape[1]

    # Clamp (letterToIndex can return -1) and gather the per-step input rows
    # (i2h row + fused biases) in XLA, off the kernel's serial critical path.
    idx = jnp.clip(letters_padded.astype(jnp.int32), 0, w_ih_b.shape[0] - 1)
    x_slab = jnp.take(w_ih_b, idx, axis=0)                      # (T_max, H)

    def const_spec(shape):
        # Full-array block, constant block index -> DMA'd once, VMEM-resident.
        return pl.BlockSpec(shape, lambda i, L: (0,) * len(shape))

    out_p, hid = pl.pallas_call(
        rnn_seq_kernel,
        out_shape=(
            jax.ShapeDtypeStruct((1, out_pad), jnp.float32),
            jax.ShapeDtypeStruct((1, H), jnp.float32),
        ),
        grid_spec=pltpu.PrefetchScalarGridSpec(
            num_scalar_prefetch=1,
            grid=(1,),                       # single invocation; time loop in-kernel
            in_specs=[
                const_spec((T_max, H)),      # x_slab
                const_spec((1, H)),          # h0
                const_spec((H, H)),          # w_hh
                const_spec((H, out_pad)),    # w_ho (padded cols)
                const_spec((1, out_pad)),    # b_ho (padded cols)
            ],
            out_specs=(
                const_spec((1, out_pad)),
                const_spec((1, H)),
            ),
        ),
        compiler_params=pltpu.CompilerParams(
            dimension_semantics=("arbitrary",)),
    )(jnp.asarray(length, jnp.int32).reshape(1),
      x_slab, h0, w_hh, w_ho_p, b_ho_p)

    return out_p[:, :output_size], hid


def rnn_sequence_forward(letters, h0, packed_params, output_size, max_len=32):
    """Run the RNN over a whole character sequence in one pallas_call.

    letters: (T,) int letter indices.  h0: (1, H) float32.
    Sequences are padded to a fixed T_max (bucket) so all lengths <= max_len
    share one compiled kernel.
    Returns (log_softmax of last step's logits [1, output_size], final hidden [1, H]).
    """
    letters = jnp.asarray(letters, jnp.int32).reshape(-1)
    T = int(letters.shape[0])
    T_max = ((max(T, max_len) + 7) // 8) * 8
    padded = jnp.zeros((T_max,), jnp.int32).at[:T].set(letters)
    return _rnn_forward_padded(padded, T, h0, packed_params, output_size)


def rnn_step(letter_idx, h, packed_params, output_size, max_len=32):
    """Single step == original PyTorch forward(one_hot(letter), hidden)."""
    letters = jnp.asarray(letter_idx, jnp.int32).reshape(1)
    return rnn_sequence_forward(letters, h, packed_params, output_size, max_len)


# ----------------------------------------------------------------------------
# Parameters
# ----------------------------------------------------------------------------
def init_params(key, input_size, hidden_size, output_size):
    """PyTorch-style uniform(-1/sqrt(fan_in), 1/sqrt(fan_in)) init.
    Weights stored as [in_features, out_features]; biases as [1, out_features]."""
    def linear(k, fan_in, fan_out):
        kw, kb = jax.random.split(k)
        bound = 1.0 / jnp.sqrt(jnp.float32(fan_in))
        w = jax.random.uniform(kw, (fan_in, fan_out), jnp.float32, -bound, bound)
        b = jax.random.uniform(kb, (1, fan_out), jnp.float32, -bound, bound)
        return w, b

    k1, k2, k3 = jax.random.split(key, 3)
    w_ih, b_ih = linear(k1, input_size, hidden_size)
    w_hh, b_hh = linear(k2, hidden_size, hidden_size)
    w_ho, b_ho = linear(k3, hidden_size, output_size)
    return (w_ih, b_ih, w_hh, b_hh, w_ho, b_ho)


def prepare_params(params, n_letters, hidden_size, output_size):
    """One-time repack for the kernel:
      * fold b_ih + b_hh into every row of W_ih (so the per-step input is a
        single gathered row, no bias add on the critical path),
      * pad the classifier to a lane-dense width of 128 columns
        (padded bias = -1e30 so it contributes ~0 to the softmax sum)."""
    w_ih, b_ih, w_hh, b_hh, w_ho, b_ho = params
    out_pad = ((output_size + LANE - 1) // LANE) * LANE

    w_ih_b = (w_ih + (b_ih + b_hh)).astype(jnp.float32)         # (n_letters, H)
    w_ho_p = jnp.zeros((hidden_size, out_pad), jnp.float32).at[:, :output_size].set(w_ho)
    b_ho_p = (jnp.full((1, out_pad), -1e30, jnp.float32)
              .at[:, :output_size].set(b_ho.reshape(-1)))
    return (w_ih_b, w_hh.astype(jnp.float32), w_ho_p, b_ho_p)


# ----------------------------------------------------------------------------
# Pure-JAX reference (exact PyTorch forward semantics, one-hot matmul path)
# ----------------------------------------------------------------------------
def rnn_reference(letters, h0, params, n_letters):
    w_ih, b_ih, w_hh, b_hh, w_ho, b_ho = params
    hp = jax.lax.Precision.HIGHEST
    h = h0
    for idx in list(letters):
        x = jax.nn.one_hot(int(idx), n_letters, dtype=jnp.float32)[None, :]
        h = jnp.tanh(jnp.dot(x, w_ih, precision=hp) + b_ih
                     + jnp.dot(h, w_hh, precision=hp) + b_hh)
    logits = jnp.dot(h, w_ho, precision=hp) + b_ho
    return jax.nn.log_softmax(logits, axis=-1), h


# ----------------------------------------------------------------------------
if __name__ == "__main__":
    all_letters = string.ascii_letters + ".,;'"
    n_letters = len(all_letters)        # 57
    n_hidden = 128
    n_categories = 18                   # number of name-origin categories

    key = jax.random.PRNGKey(0)
    params = init_params(key, n_letters, n_hidden, n_categories)
    packed = prepare_params(params, n_letters, n_hidden, n_categories)

    # lineToTensor('Albert') -> sequence of letter indices (kernel never builds one-hots).
    name = "Albert"
    letters = jnp.array([all_letters.find(c) for c in name], jnp.int32)
    h0 = jnp.zeros((1, n_hidden), jnp.float32)      # initHidden()

    # Fused sequence forward (one pallas_call, in-kernel time loop).
    out, h_final = rnn_sequence_forward(letters, h0, packed, n_categories)
    jax.block_until_ready((out, h_final))

    # A different-length name reuses the same compiled kernel (same padded T_max).
    name2 = "Satoshi"
    letters2 = jnp.array([all_letters.find(c) for c in name2], jnp.int32)
    out2, h2 = rnn_sequence_forward(letters2, h0, packed, n_categories)
    jax.block_until_ready((out2, h2))

    # Single-step API (T=1), same as the original forward(input, hidden).
    out1, h1 = rnn_step(letters[0], h0, packed, n_categories)
    jax.block_until_ready((out1, h1))

    # Checks against the exact PyTorch-semantics reference.
    ref_out, ref_h = rnn_reference(letters, h0, params, n_letters)
    ref_out2, ref_h2 = rnn_reference(letters2, h0, params, n_letters)
    assert out.shape == (1, n_categories)
    assert h_final.shape == (1, n_hidden)
    assert jnp.allclose(jnp.sum(jnp.exp(out), axis=-1), 1.0, atol=1e-4)
    assert jnp.allclose(out, ref_out, atol=1e-2, rtol=1e-2)
    assert jnp.allclose(h_final, ref_h, atol=1e-2, rtol=1e-2)
    assert jnp.allclose(out2, ref_out2, atol=1e-2, rtol=1e-2)
    assert jnp.allclose(h2, ref_h2, atol=1e-2, rtol=1e-2)

    print("KERNEL_OK")
</pallas_src>

<mosaic_0001>
module attributes {stable_mosaic.version = 11 : i64} {
  func.func @rnn_seq_kernel(%arg0: i32, %arg1: memref<1xi32, #tpu.memory_space<smem>>, %arg2: memref<32x128xf32, #tpu.memory_space<vmem>>, %arg3: memref<1x128xf32, #tpu.memory_space<vmem>>, %arg4: memref<128x128xf32, #tpu.memory_space<vmem>>, %arg5: memref<128x128xf32, #tpu.memory_space<vmem>>, %arg6: memref<1x128xf32, #tpu.memory_space<vmem>>, %arg7: memref<1x128xf32, #tpu.memory_space<vmem>>, %arg8: memref<1x128xf32, #tpu.memory_space<vmem>>) attributes {dimension_semantics = [#tpu.dimension_semantics<arbitrary>], iteration_bounds = array<i64: 1>, scalar_prefetch = 1 : i64, scratch_operands = 0 : i64, tpu.core_type = #tpu.core_type<tc>, window_params = [{pipeline_mode = #tpu.pipeline_mode<synchronous>, transform_indices = @transform_0, window_bounds = array<i64: 32, 128>}, {pipeline_mode = #tpu.pipeline_mode<synchronous>, transform_indices = @transform_1, window_bounds = array<i64: 1, 128>}, {pipeline_mode = #tpu.pipeline_mode<synchronous>, transform_indices = @transform_2, window_bounds = array<i64: 128, 128>}, {pipeline_mode = #tpu.pipeline_mode<synchronous>, transform_indices = @transform_3, window_bounds = array<i64: 128, 128>}, {pipeline_mode = #tpu.pipeline_mode<synchronous>, transform_indices = @transform_4, window_bounds = array<i64: 1, 128>}, {pipeline_mode = #tpu.pipeline_mode<synchronous>, transform_indices = @transform_5, window_bounds = array<i64: 1, 128>}, {pipeline_mode = #tpu.pipeline_mode<synchronous>, transform_indices = @transform_6, window_bounds = array<i64: 1, 128>}]} {
    %c0 = arith.constant 0 : index
    %0 = memref.load %arg1[%c0] : memref<1xi32, #tpu.memory_space<smem>>
    %c0_0 = arith.constant 0 : index
    %c0_1 = arith.constant 0 : index
    %1 = vector.load %arg4[%c0_0, %c0_1] : memref<128x128xf32, #tpu.memory_space<vmem>>, vector<128x128xf32>
    %c0_2 = arith.constant 0 : index
    %c0_3 = arith.constant 0 : index
    %2 = vector.load %arg3[%c0_2, %c0_3] : memref<1x128xf32, #tpu.memory_space<vmem>>, vector<1x128xf32>
    %c0_i32 = arith.constant 0 : i32
    %3 = arith.subi %0, %c0_i32 : i32
    %4 = arith.addi %c0_i32, %3 : i32
    %c1_i32 = arith.constant 1 : i32
    %5 = scf.for %arg9 = %c0_i32 to %4 step %c1_i32 iter_args(%arg10 = %2) -> (vector<1x128xf32>)  : i32 {
      %22 = arith.index_cast %arg9 : i32 to index
      %c0_14 = arith.constant 0 : index
      %23 = vector.load %arg2[%22, %c0_14] : memref<32x128xf32, #tpu.memory_space<vmem>>, vector<1x128xf32>
      %cst_15 = arith.constant dense<0.000000e+00> : vector<1x128xf32>
      %24 = tpu.matmul %arg10, %1, %cst_15 {dimension_numbers = #tpu.dot_dimension_numbers<[1], [0], [0], [1], [0, 0, 1, 1], [], []>} : vector<1x128xf32>, vector<128x128xf32>, vector<1x128xf32> -> vector<1x128xf32>
      %25 = arith.addf %23, %24 : vector<1x128xf32>
      %26 = math.tanh %25 : vector<1x128xf32>
      scf.yield %26 : vector<1x128xf32>
    }
    %c0_4 = arith.constant 0 : index
    %c0_5 = arith.constant 0 : index
    %6 = vector.load %arg5[%c0_4, %c0_5] : memref<128x128xf32, #tpu.memory_space<vmem>>, vector<128x128xf32>
    %cst = arith.constant dense<0.000000e+00> : vector<1x128xf32>
    %7 = tpu.matmul %5, %6, %cst {dimension_numbers = #tpu.dot_dimension_numbers<[1], [0], [0], [1], [0, 0, 1, 1], [], []>} : vector<1x128xf32>, vector<128x128xf32>, vector<1x128xf32> -> vector<1x128xf32>
    %c0_6 = arith.constant 0 : index
    %c0_7 = arith.constant 0 : index
    %8 = vector.load %arg6[%c0_6, %c0_7] : memref<1x128xf32, #tpu.memory_space<vmem>>, vector<1x128xf32>
    %9 = arith.addf %7, %8 : vector<1x128xf32>
    %cst_8 = arith.constant dense<0xFF800000> : vector<1xf32>
    %10 = vector.multi_reduction <maximumf>, %9, %cst_8 [1] : vector<1x128xf32> to vector<1xf32>
    %11 = vector.shape_cast %10 : vector<1xf32> to vector<1x1xf32>
    %12 = vector.broadcast %11 : vector<1x1xf32> to vector<1x128xf32>
    %13 = arith.subf %9, %12 : vector<1x128xf32>
    %14 = math.exp %13 : vector<1x128xf32>
    %cst_9 = arith.constant dense<0.000000e+00> : vector<1xf32>
    %15 = vector.multi_reduction <add>, %14, %cst_9 [1] : vector<1x128xf32> to vector<1xf32>
    %16 = vector.shape_cast %15 : vector<1xf32> to vector<1x1xf32>
    %17 = math.log %16 : vector<1x1xf32>
    %18 = vector.broadcast %17 : vector<1x1xf32> to vector<1x128xf32>
    %19 = arith.subf %13, %18 : vector<1x128xf32>
    %c0_10 = arith.constant 0 : index
    %c0_11 = arith.constant 0 : index
    %20 = vector.load %arg7[%c0_10, %c0_11] : memref<1x128xf32, #tpu.memory_space<vmem>>, vector<1x128xf32>
    tpu.vector_store %arg7[%c0_10, %c0_11], %19 {strides = array<i32>} : memref<1x128xf32, #tpu.memory_space<vmem>>, vector<1x128xf32>,
    %c0_12 = arith.constant 0 : index
    %c0_13 = arith.constant 0 : index
    %21 = vector.load %arg8[%c0_12, %c0_13] : memref<1x128xf32, #tpu.memory_space<vmem>>, vector<1x128xf32>
    tpu.vector_store %arg8[%c0_12, %c0_13], %5 {strides = array<i32>} : memref<1x128xf32, #tpu.memory_space<vmem>>, vector<1x128xf32>,
    return
  }
  func.func @transform_0(%arg0: i32, %arg1: memref<1xi32, #tpu.memory_space<smem>>) -> (i32, i32) {
    %c0_i32 = arith.constant 0 : i32
    %c0_i32_0 = arith.constant 0 : i32
    %c0_i32_1 = arith.constant 0 : i32
    return %c0_i32, %c0_i32_0 : i32, i32
  }
  func.func @transform_1(%arg0: i32, %arg1: memref<1xi32, #tpu.memory_space<smem>>) -> (i32, i32) {
    %c0_i32 = arith.constant 0 : i32
    %c0_i32_0 = arith.constant 0 : i32
    %c0_i32_1 = arith.constant 0 : i32
    return %c0_i32, %c0_i32_0 : i32, i32
  }
  func.func @transform_2(%arg0: i32, %arg1: memref<1xi32, #tpu.memory_space<smem>>) -> (i32, i32) {
    %c0_i32 = arith.constant 0 : i32
    %c0_i32_0 = arith.constant 0 : i32
    %c0_i32_1 = arith.constant 0 : i32
    return %c0_i32, %c0_i32_0 : i32, i32
  }
  func.func @transform_3(%arg0: i32, %arg1: memref<1xi32, #tpu.memory_space<smem>>) -> (i32, i32) {
    %c0_i32 = arith.constant 0 : i32
    %c0_i32_0 = arith.constant 0 : i32
    %c0_i32_1 = arith.constant 0 : i32
    return %c0_i32, %c0_i32_0 : i32, i32
  }
  func.func @transform_4(%arg0: i32, %arg1: memref<1xi32, #tpu.memory_space<smem>>) -> (i32, i32) {
    %c0_i32 = arith.constant 0 : i32
    %c0_i32_0 = arith.constant 0 : i32
    %c0_i32_1 = arith.constant 0 : i32
    return %c0_i32, %c0_i32_0 : i32, i32
  }
  func.func @transform_5(%arg0: i32, %arg1: memref<1xi32, #tpu.memory_space<smem>>) -> (i32, i32) {
    %c0_i32 = arith.constant 0 : i32
    %c0_i32_0 = arith.constant 0 : i32
    %c0_i32_1 = arith.constant 0 : i32
    return %c0_i32, %c0_i32_0 : i32, i32
  }
  func.func @transform_6(%arg0: i32, %arg1: memref<1xi32, #tpu.memory_space<smem>>) -> (i32, i32) {
    %c0_i32 = arith.constant 0 : i32
    %c0_i32_0 = arith.constant 0 : i32
    %c0_i32_1 = arith.constant 0 : i32
    return %c0_i32, %c0_i32_0 : i32, i32
  }
}

</mosaic_0001>

<llo_original>
// kernel: _rnn_forward_padded.1
$region0: #{_rnn_forward_padded.1}
  #allocation0 [shape = 'u32[]', space=smem, size = 0x4, offset = 0x4, fixed_abs, tag = 'smem constant byte address 0x4 - core index']
  #allocation1 [shape = 'u32[144,128]{1,0:T(1,128)}', space=vmem, size = 0x12000, scoped, tag = 'internal scratch']
  #allocation2 [shape = 's32[1]{0}', space=sflag, size = 0x4, scoped, tag = 'scoped memory for _rnn_forward_padded.1']
  #allocation3 [shape = 's32[1]{0:T(128)S(6)}', space=smem, size = 0x200, scoped, tag = 'prefetched SMEM operand 0']
  %s0 = inlined_call_operand.<no memory space> [shape: s32[1], index: 0, kind: input, shape index: {}]
  %s1 = inlined_call_operand.vmem [shape: f32[32,128], index: 1, kind: input, shape index: {}]
  %s2 = inlined_call_operand.vmem [shape: f32[1,128], index: 2, kind: input, shape index: {}]
  %s3 = inlined_call_operand.vmem [shape: f32[128,128], index: 3, kind: input, shape index: {}]
  %s4 = inlined_call_operand.vmem [shape: f32[128,128], index: 4, kind: input, shape index: {}]
  %s5 = inlined_call_operand.vmem [shape: f32[1,128], index: 5, kind: input, shape index: {}]
  %s6 = inlined_call_operand.hbm [shape: f32[1,128], index: 6, kind: output, shape index: {0}]
  %s7 = inlined_call_operand.hbm [shape: f32[1,128], index: 7, kind: output, shape index: {1}]
  %8 = xla_tuple %s6, %s7
  %s9 = sld [smem:[#allocation0]]
  $region45: #{_rnn_forward_padded.1} parent=0
    _
  %s11 = ssub.s32 1, %s9
  %s12 = scalar_select 0, %s11, %s9
  %13 = sst [smem:[#allocation3]] %s0
  $region1: #{_rnn_forward_padded.1} parent=0
    #allocation4 [shape = 'u8[512]{0}', space=vmem, size = 0x400, scoped, tag = 'output window, operand 0, single buffered']
    #allocation5 [shape = 's32[1]{0}', space=sflag, size = 0x4, scoped, tag = 'scoped memory for _rnn_forward_padded.1']
    #allocation6 [shape = 'u8[512]{0}', space=vmem, size = 0x400, scoped, tag = 'output window, operand 1, single buffered']
    #allocation7 [shape = 's32[1]{0}', space=sflag, size = 0x4, scoped, tag = 'scoped memory for _rnn_forward_padded.1']
    %14 = vsyncpa [#allocation5], 0
    %15 = vsyncpa [#allocation7], 0
    // Predicated region
    $region2: #{_rnn_forward_padded.1} parent=1 // pred_check
      _
    $region3: #{_rnn_forward_padded.1} parent=1 // pred_check_branch
      %17 = sbr.rel (0) target = $region5
    $region4: #{_rnn_forward_padded.1} parent=1 // pred_region
      _
    $region5: #{_rnn_forward_padded.1} parent=1 // pred_fallthru
      _
    // Predicated region
    $region6: #{_rnn_forward_padded.1} parent=1 // pred_check
      _
    $region7: #{_rnn_forward_padded.1} parent=1 // pred_check_branch
      %19 = sbr.rel (0) target = $region9
    $region8: #{_rnn_forward_padded.1} parent=1 // pred_region
      _
    $region9: #{_rnn_forward_padded.1} parent=1 // pred_fallthru
      _
    // Predicated region
    $region10: #{_rnn_forward_padded.1} parent=1 // pred_check
      _
    $region11: #{_rnn_forward_padded.1} parent=1 // pred_check_branch
      %21 = sbr.rel (0) target = $region13
    $region12: #{_rnn_forward_padded.1} parent=1 // pred_region
      _
    $region13: #{_rnn_forward_padded.1} parent=1 // pred_fallthru
      _
    // Predicated region
    $region14: #{_rnn_forward_padded.1} parent=1 // pred_check
      _
    $region15: #{_rnn_forward_padded.1} parent=1 // pred_check_branch
      %23 = sbr.rel (0) target = $region17
    $region16: #{_rnn_forward_padded.1} parent=1 // pred_region
      _
    $region17: #{_rnn_forward_padded.1} parent=1 // pred_fallthru
      _
    // Predicated region
    $region18: #{_rnn_forward_padded.1} parent=1 // pred_check
      _
    $region19: #{_rnn_forward_padded.1} parent=1 // pred_check_branch
      %25 = sbr.rel (0) target = $region21
    $region20: #{_rnn_forward_padded.1} parent=1 // pred_region
      _
    $region21: #{_rnn_forward_padded.1} parent=1 // pred_fallthru
      _
    %s26 = sld [smem:[#allocation3]]
    %v27 = vld [vmem:[%s3] sm:$0xff]
    %v28 = vld [vmem:[%s3 + $0x8] sm:$0xff]
    %v29 = vld [vmem:[%s3 + $0x10] sm:$0xff]
    %v30 = vld [vmem:[%s3 + $0x18] sm:$0xff]
    %v31 = vld [vmem:[%s3 + $0x20] sm:$0xff]
    %v32 = vld [vmem:[%s3 + $0x28] sm:$0xff]
    %v33 = vld [vmem:[%s3 + $0x30] sm:$0xff]
    %v34 = vld [vmem:[%s3 + $0x38] sm:$0xff]
    %v35 = vld [vmem:[%s3 + $0x40] sm:$0xff]
    %v36 = vld [vmem:[%s3 + $0x48] sm:$0xff]
    %v37 = vld [vmem:[%s3 + $0x50] sm:$0xff]
    %v38 = vld [vmem:[%s3 + $0x58] sm:$0xff]
    %v39 = vld [vmem:[%s3 + $0x60] sm:$0xff]
    %v40 = vld [vmem:[%s3 + $0x68] sm:$0xff]
    %v41 = vld [vmem:[%s3 + $0x70] sm:$0xff]
    %v42 = vld [vmem:[%s3 + $0x78] sm:$0xff]
    %v43 = vld [vmem:[%s2] sm:$0x1]
    // While loop
    $region22: #{_rnn_forward_padded.1} parent=1 // loop_pre_header
      _
    $region23: #{_rnn_forward_padded.1} parent=1 // loop_header
      %s45 = sphi 0, %s47
      %p46 = scmp.ge.s32.totalorder %s45, %s26
      %v50 = vphi %v43, %v124
    $region24: #{_rnn_forward_padded.1} parent=1 // loop_header_branch
      %49 = sbr.rel (%p46) target = $region28
    $region25: #{_rnn_forward_padded.1} parent=1 // loop_body
      %s51 = scalar_lea.vmem %s1, %s45
      %v52 = vld [vmem:[%s51] sm:$0x1]
      %53 = vmatprep.subr.mxu0 0.0
      %54 = vmatpush1.msra.mxu0 %v27
      %55 = vmatprep.subr.mxu0 0.0
      %56 = vmatpush1.msra.mxu0 %v28
      %57 = vmatprep.subr.mxu0 0.0
      %58 = vmatpush1.msra.mxu0 %v29
      %59 = vmatprep.subr.mxu0 0.0
      %60 = vmatpush1.msra.mxu0 %v30
      %61 = vmatprep.subr.mxu0 0.0
      %62 = vmatpush1.msra.mxu0 %v31
      %63 = vmatprep.subr.mxu0 0.0
      %64 = vmatpush1.msra.mxu0 %v32
      %65 = vmatprep.subr.mxu0 0.0
      %66 = vmatpush1.msra.mxu0 %v33
      %67 = vmatprep.subr.mxu0 0.0
      %68 = vmatpush1.msra.mxu0 %v34
      %69 = vmatprep.subr.mxu0 0.0
      %70 = vmatpush1.msra.mxu0 %v35
      %71 = vmatprep.subr.mxu0 0.0
      %72 = vmatpush1.msra.mxu0 %v36
      %73 = vmatprep.subr.mxu0 0.0
      %74 = vmatpush1.msra.mxu0 %v37
      %75 = vmatprep.subr.mxu0 0.0
      %76 = vmatpush1.msra.mxu0 %v38
      %77 = vmatprep.subr.mxu0 0.0
      %78 = vmatpush1.msra.mxu0 %v39
      %79 = vmatprep.subr.mxu0 0.0
      %80 = vmatpush1.msra.mxu0 %v40
      %81 = vmatprep.subr.mxu0 0.0
      %82 = vmatpush1.msra.mxu0 %v41
      %83 = vmatprep.subr.mxu0 0.0
      %84 = vmatpush1.msra.mxu0 %v42
      %85 = vmatprep.subr.mxu0 0.0
      %86 = vmatpush1.msra.mxu0 0.0
      %87 = vmatprep.subr.mxu0 0.0
      %88 = vmatpush1.msra.mxu0 0.0
      %89 = vmatprep.subr.mxu0 0.0
      %90 = vmatpush1.msra.mxu0 0.0
      %91 = vmatprep.subr.mxu0 0.0
      %92 = vmatpush1.msra.mxu0 0.0
      %93 = vmatprep.subr.mxu0 0.0
      %94 = vmatpush1.msra.mxu0 0.0
      %95 = vmatprep.subr.mxu0 0.0
      %96 = vmatpush1.msra.mxu0 0.0
      %97 = vmatprep.subr.mxu0 0.0
      %98 = vmatpush1.msra.mxu0 0.0
      %99 = vmatprep.subr.mxu0 0.0
      %100 = vmatpush1.msra.mxu0 0.0
      %101 = vmatprep.subr.mxu0 0.0
      %102 = vmatpush1.msra.mxu0 0.0
      %103 = vmatprep.subr.mxu0 0.0
      %104 = vmatpush1.msra.mxu0 0.0
      %105 = vmatprep.subr.mxu0 0.0
      %106 = vmatpush1.msra.mxu0 0.0
      %107 = vmatprep.subr.mxu0 0.0
      %108 = vmatpush1.msra.mxu0 0.0
      %109 = vmatprep.subr.mxu0 0.0
      %110 = vmatpush1.msra.mxu0 0.0
      %111 = vmatprep.subr.mxu0 0.0
      %112 = vmatpush1.msra.mxu0 0.0
      %113 = vmatprep.subr.mxu0 0.0
      %114 = vmatpush1.msra.mxu0 0.0
      %115 = vmatprep.subr.mxu0 0.0
      %116 = vmatpush1.msra.mxu0 0.0
      %117 = vmatprep.mubr.f32.mxu0 0.0
      %118 = vmatmul.mubr.f32.gmra.mrb[0].mxu0 %v50
      %v119 = vpop.f32.mrb[0].mxu0
      %v120 = vadd.f32 0.0, %v119
      %v121 = vpop.f32.mrb[0].mxu0
      %122 = vdwg.mxu0
      %v123 = vadd.f32 %v52, %v120
      %v124 = vtanh.pop %v123
    $region26: #{_rnn_forward_padded.1} parent=1 // loop_footer
      %s47 = sadd.s32 %s45, 1
    $region27: #{_rnn_forward_padded.1} parent=1 // loop_footer_branch
      %44 = sbr.rel target = $region23
    $region28: #{_rnn_forward_padded.1} parent=1 // loop_exit
      _
    %v125 = vld [vmem:[%s4] sm:$0xff]
    %v126 = vld [vmem:[%s4 + $0x8] sm:$0xff]
    %v127 = vld [vmem:[%s4 + $0x10] sm:$0xff]
    %v128 = vld [vmem:[%s4 + $0x18] sm:$0xff]
    %v129 = vld [vmem:[%s4 + $0x20] sm:$0xff]
    %v130 = vld [vmem:[%s4 + $0x28] sm:$0xff]
    %v131 = vld [vmem:[%s4 + $0x30] sm:$0xff]
    %v132 = vld [vmem:[%s4 + $0x38] sm:$0xff]
    %v133 = vld [vmem:[%s4 + $0x40] sm:$0xff]
    %v134 = vld [vmem:[%s4 + $0x48] sm:$0xff]
    %v135 = vld [vmem:[%s4 + $0x50] sm:$0xff]
    %v136 = vld [vmem:[%s4 + $0x58] sm:$0xff]
    %v137 = vld [vmem:[%s4 + $0x60] sm:$0xff]
    %v138 = vld [vmem:[%s4 + $0x68] sm:$0xff]
    %v139 = vld [vmem:[%s4 + $0x70] sm:$0xff]
    %v140 = vld [vmem:[%s4 + $0x78] sm:$0xff]
    %v141 = vld [vmem:[%s5] sm:$0x1]
    %142 = vmatprep.subr.mxu0 0.0
    %143 = vmatpush1.msra.mxu0 %v125
    %144 = vmatprep.subr.mxu0 0.0
    %145 = vmatpush1.msra.mxu0 %v126
    %146 = vmatprep.subr.mxu0 0.0
    %147 = vmatpush1.msra.mxu0 %v127
    %148 = vmatprep.subr.mxu0 0.0
    %149 = vmatpush1.msra.mxu0 %v128
    %150 = vmatprep.subr.mxu0 0.0
    %151 = vmatpush1.msra.mxu0 %v129
    %152 = vmatprep.subr.mxu0 0.0
    %153 = vmatpush1.msra.mxu0 %v130
    %154 = vmatprep.subr.mxu0 0.0
    %155 = vmatpush1.msra.mxu0 %v131
    %156 = vmatprep.subr.mxu0 0.0
    %157 = vmatpush1.msra.mxu0 %v132
    %158 = vmatprep.subr.mxu0 0.0
    %159 = vmatpush1.msra.mxu0 %v133
    %160 = vmatprep.subr.mxu0 0.0
    %161 = vmatpush1.msra.mxu0 %v134
    %162 = vmatprep.subr.mxu0 0.0
    %163 = vmatpush1.msra.mxu0 %v135
    %164 = vmatprep.subr.mxu0 0.0
    %165 = vmatpush1.msra.mxu0 %v136
    %166 = vmatprep.subr.mxu0 0.0
    %167 = vmatpush1.msra.mxu0 %v137
    %168 = vmatprep.subr.mxu0 0.0
    %169 = vmatpush1.msra.mxu0 %v138
    %170 = vmatprep.subr.mxu0 0.0
    %171 = vmatpush1.msra.mxu0 %v139
    %172 = vmatprep.subr.mxu0 0.0
    %173 = vmatpush1.msra.mxu0 %v140
    %174 = vmatprep.subr.mxu0 0.0
    %175 = vmatpush1.msra.mxu0 0.0
    %176 = vmatprep.subr.mxu0 0.0
    %177 = vmatpush1.msra.mxu0 0.0
    %178 = vmatprep.subr.mxu0 0.0
    %179 = vmatpush1.msra.mxu0 0.0
    %180 = vmatprep.subr.mxu0 0.0
    %181 = vmatpush1.msra.mxu0 0.0
    %182 = vmatprep.subr.mxu0 0.0
    %183 = vmatpush1.msra.mxu0 0.0
    %184 = vmatprep.subr.mxu0 0.0
    %185 = vmatpush1.msra.mxu0 0.0
    %186 = vmatprep.subr.mxu0 0.0
    %187 = vmatpush1.msra.mxu0 0.0
    %188 = vmatprep.subr.mxu0 0.0
    %189 = vmatpush1.msra.mxu0 0.0
    %190 = vmatprep.subr.mxu0 0.0
    %191 = vmatpush1.msra.mxu0 0.0
    %192 = vmatprep.subr.mxu0 0.0
    %193 = vmatpush1.msra.mxu0 0.0
    %194 = vmatprep.subr.mxu0 0.0
    %195 = vmatpush1.msra.mxu0 0.0
    %196 = vmatprep.subr.mxu0 0.0
    %197 = vmatpush1.msra.mxu0 0.0
    %198 = vmatprep.subr.mxu0 0.0
    %199 = vmatpush1.msra.mxu0 0.0
    %200 = vmatprep.subr.mxu0 0.0
    %201 = vmatpush1.msra.mxu0 0.0
    %202 = vmatprep.subr.mxu0 0.0
    %203 = vmatpush1.msra.mxu0 0.0
    %204 = vmatprep.subr.mxu0 0.0
    %205 = vmatpush1.msra.mxu0 0.0
    %206 = vmatprep.mubr.f32.mxu0 0.0
    %207 = vmatmul.mubr.f32.gmra.mrb[0].mxu0 %v50
    %v208 = vpop.f32.mrb[0].mxu0
    %v209 = vadd.f32 %v141, %v208
    %v210 = vpop.f32.mrb[0].mxu0
    %211 = vdwg.mxu0
    %vm212 = vcmask 1040384
    %v213 = vsel %vm212, %v209, -inf
    %214 = vmax.xlane.f32.xlu0 %v213
    %v215 = vpop.xlane.xlu0 %214
    %v216 = vsub.f32 %v209, %v215
    %v217 = vmul.f32 %v216, 1.442695
    %v218 = vpow.pop %v217
    %v219 = vsel %vm212, %v218, 0.0
    %220 = vadd.xlane.f32.xlu0 %v219
    %v221 = vpop.xlane.xlu0 %220
    %v222 = vlog2.pop %v221
    %v223 = vmul.f32 %v222, 0.6931472
    %v224 = vsub.f32 %v216, %v223
    %225 = vst [vmem:[#allocation4] sm:$0x1] %v224
    %226 = vst [vmem:[#allocation6] sm:$0x1] %v50
    // Predicated region
    $region29: #{_rnn_forward_padded.1} parent=1 // pred_check
      _
    $region30: #{_rnn_forward_padded.1} parent=1 // pred_check_branch
      %228 = sbr.rel (0) target = $region32
    $region31: #{_rnn_forward_padded.1} parent=1 // pred_region
      %s230 = ssub.s32 16, 16
      %231 = vsyncadd [#allocation5], %s230
      %s233 = sshll.u32 [#allocation4], 4
      %s234 = int_to_ptr.vmem [resolvable:$true] %s233
      %236 = dma.vmem_to_hbm [thread:$0]  %s234, 16, %s6, [#allocation5]
    $region32: #{_rnn_forward_padded.1} parent=1 // pred_fallthru
      _
    // Predicated region
    $region33: #{_rnn_forward_padded.1} parent=1 // pred_check
      _
    $region34: #{_rnn_forward_padded.1} parent=1 // pred_check_branch
      %238 = sbr.rel (0) target = $region36
    $region35: #{_rnn_forward_padded.1} parent=1 // pred_region
      %s240 = ssub.s32 16, 16
      %241 = vsyncadd [#allocation7], %s240
      %s243 = sshll.u32 [#allocation6], 4
      %s244 = int_to_ptr.vmem [resolvable:$true] %s243
      %246 = dma.vmem_to_hbm [thread:$0]  %s244, 16, %s7, [#allocation7]
    $region36: #{_rnn_forward_padded.1} parent=1 // pred_fallthru
      _
    // Predicated region
    $region37: #{_rnn_forward_padded.1} parent=1 // pred_check
      _
    $region38: #{_rnn_forward_padded.1} parent=1 // pred_check_branch
      %248 = sbr.rel (0) target = $region40
    $region39: #{_rnn_forward_padded.1} parent=1 // pred_region
      %249 = dma.done [#allocation5], 16
    $region40: #{_rnn_forward_padded.1} parent=1 // pred_fallthru
      _
    // Predicated region
    $region41: #{_rnn_forward_padded.1} parent=1 // pred_check
      _
    $region42: #{_rnn_forward_padded.1} parent=1 // pred_check_branch
      %251 = sbr.rel (0) target = $region44
    $region43: #{_rnn_forward_padded.1} parent=1 // pred_region
      %252 = dma.done [#allocation7], 16
    $region44: #{_rnn_forward_padded.1} parent=1 // pred_fallthru
      _
    %253 = vsyncpa [#allocation5], 1
    %254 = vsyncpa [#allocation7], 1

</llo_original>
